<compile_context>
chip_gen: v7x
topology: tpu7x:2x2x1
jax: 0.10.0
libtpu: 0.0.40
codegen_flags: <defaults>
</compile_context>

<pallas_src>
import functools

import jax
import jax.numpy as jnp
from jax import lax
from jax.experimental import pallas as pl
from jax.experimental.pallas import tpu as pltpu


def _round_up(n: int, m: int) -> int:
    return ((n + m - 1) // m) * m


def _vmem_limit_and_budget():
    """Generation-gated VMEM scoped limit + planning budget (bytes)."""
    cap = 64 * 1024 * 1024  # conservative default: v7x per-TensorCore VMEM
    try:
        info = pltpu.get_tpu_info()
        c = getattr(info, "vmem_capacity_bytes", None)
        if c:
            cap = int(c)
    except Exception:
        pass
    limit = max(32 * 1024 * 1024, min((cap * 3) // 4, 100 * 1024 * 1024))
    budget = max(24 * 1024 * 1024, limit - 8 * 1024 * 1024)
    return limit, budget


def _pick_tm(tm, M, D, H, x_itemsize, w_itemsize, o_itemsize, budget):
    """Row tile: multiple of 8, >= ~4 grid steps (pipelining / 2 per TC on
    v7x), and small enough that double-buffered x/out tiles + single-buffered
    resident weights fit the VMEM budget (real itemsizes, lane padding)."""
    tm = max(8, min(_round_up(tm, 8), _round_up(M, 8)))
    tm = min(tm, max(8, _round_up(pl.cdiv(M, 4), 8)))
    Dl = _round_up(D, 128)  # VMEM lane padding of the last dim
    Hl = _round_up(H, 128)
    w_bytes = 2 * Dl * Hl * w_itemsize + Dl * 4  # W_a^T + W_b^T + base, Buffered(1)

    def est(t):
        return 2 * t * Dl * (x_itemsize + o_itemsize) + w_bytes

    while tm > 8 and est(tm) > budget:
        tm = max(8, ((tm // 2) // 8) * 8)
    return tm


def _lora_mlp_kernel(x_ref, wa_ref, wb_ref, base_ref, o_ref, *, precision):
    # x_ref:    (tm, D)  input dtype (cast to MXU dtype in-kernel, on the VPU)
    # wa_ref:   (D, H)   compute dtype  == W_a^T  (canonical (M,K)x(K,N))
    # wb_ref:   (H, D)   compute dtype  == W_b^T
    # base_ref: (1, D)   float32
    # o_ref:    (tm, D)  output dtype
    wa = wa_ref[...]
    wb = wb_ref[...]
    x = x_ref[...].astype(wa.dtype)

    # h = tanh(x @ W_a^T): MXU matmul, f32 accumulation; tanh on EUP in f32.
    h = jnp.tanh(
        jnp.dot(x, wa, preferred_element_type=jnp.float32, precision=precision)
    )
    # y = h @ W_b^T: feed the MXU in the weights' dtype, accumulate in f32.
    y = jnp.dot(
        h.astype(wb.dtype), wb, preferred_element_type=jnp.float32, precision=precision
    )
    o_ref[...] = (base_ref[...] + y).astype(o_ref.dtype)


def lora_mlp(x, base, w_a, w_b, *, tm=1024, compute_dtype=jnp.bfloat16):
    """
    x:    (..., D)  float32/bf16
    base: (D,)      float32
    w_a:  (H, D)    float32  (nn.Linear(dim, dim_hidden).weight layout)
    w_b:  (D, H)    float32  (nn.Linear(dim_hidden, dim).weight layout)
    compute_dtype: dtype fed to the MXU (default bf16; accumulation, tanh and
                   the base-add stay float32).  Pass jnp.float32 for a
                   full-precision (HIGHEST) MXU path.
    returns: same shape & dtype as x
    """
    orig_shape = x.shape
    orig_dtype = x.dtype
    D = orig_shape[-1]
    H = w_a.shape[0]

    x2 = x.reshape(-1, D)
    M = x2.shape[0]

    cdtype = jnp.dtype(compute_dtype)
    # f32 MXU operands: pin full precision (otherwise bf16-class error).
    precision = (
        lax.Precision.HIGHEST if cdtype == jnp.float32 else lax.Precision.DEFAULT
    )

    # One-time transposes / casts of the tiny weights (amortizes to ~0).
    wa_t = w_a.T.astype(cdtype)                      # (D, H)
    wb_t = w_b.T.astype(cdtype)                      # (H, D)
    base2 = base.astype(jnp.float32).reshape(1, D)   # (1, D)

    vmem_limit, vmem_budget = _vmem_limit_and_budget()
    x_isz = jnp.dtype(orig_dtype).itemsize
    o_isz = x_isz
    w_isz = cdtype.itemsize
    tm = _pick_tm(tm, M, D, H, x_isz, w_isz, o_isz, vmem_budget)
    steps = pl.cdiv(M, tm)

    # With small tiles one-deep prefetch no longer hides per-step DMA latency;
    # a third x buffer is cheap once the weights are single-buffered.
    x_pipeline = pl.Buffered(3) if (tm <= 128 and steps >= 3) else None

    cost = pl.CostEstimate(
        flops=4 * M * D * H,               # two matmuls: 2*M*D*H flops each
        transcendentals=M * H,             # tanh
        bytes_accessed=(
            M * D * (x_isz + o_isz)        # x + out
            + 2 * D * H * w_isz            # W_a^T + W_b^T
            + D * 4                        # base
        ),
    )

    out = pl.pallas_call(
        functools.partial(_lora_mlp_kernel, precision=precision),
        out_shape=jax.ShapeDtypeStruct((M, D), orig_dtype),
        grid_spec=pltpu.PrefetchScalarGridSpec(
            num_scalar_prefetch=0,
            grid=(steps,),
            in_specs=[
                pl.BlockSpec((tm, D), lambda i: (i, 0), pipeline_mode=x_pipeline),
                pl.BlockSpec((D, H), lambda i: (0, 0), pipeline_mode=pl.Buffered(1)),
                pl.BlockSpec((H, D), lambda i: (0, 0), pipeline_mode=pl.Buffered(1)),
                pl.BlockSpec((1, D), lambda i: (0, 0), pipeline_mode=pl.Buffered(1)),
            ],
            out_specs=pl.BlockSpec((tm, D), lambda i: (i, 0)),
        ),
        compiler_params=pltpu.CompilerParams(
            dimension_semantics=("parallel",),
            vmem_limit_bytes=vmem_limit,
        ),
        cost_estimate=cost,
    )(x2, wa_t, wb_t, base2)

    return out.reshape(orig_shape)


if __name__ == "__main__":
    # small shapes: batch=2, seq=8, dim=32, dim_hidden=16
    B, S, D, H = 2, 8, 32, 16

    key = jax.random.PRNGKey(0)
    kx, ka, kb = jax.random.split(key, 3)

    x = jax.random.normal(kx, (B, S, D), dtype=jnp.float32)

    # deterministic parameter init (module default: base = zeros(dim))
    base = jnp.zeros((D,), dtype=jnp.float32)
    w_a = jax.random.normal(ka, (H, D), dtype=jnp.float32) * 0.1  # nn.Linear(D, H).weight
    w_b = jax.random.normal(kb, (D, H), dtype=jnp.float32) * 0.1  # nn.Linear(H, D).weight

    # reference in plain JAX
    ref = base + jnp.tanh(x @ w_a.T) @ w_b.T

    # default path: bf16 MXU operands, f32 accumulation -> bf16-class tolerance
    out_bf16 = jax.block_until_ready(lora_mlp(x, base, w_a, w_b))
    assert out_bf16.shape == x.shape and out_bf16.dtype == x.dtype
    assert jnp.allclose(out_bf16, ref, atol=2e-2, rtol=2e-2)

    # explicit f32 path (precision=HIGHEST on the MXU): tight tolerance
    out_f32 = jax.block_until_ready(
        lora_mlp(x, base, w_a, w_b, compute_dtype=jnp.float32)
    )
    assert out_f32.shape == x.shape
    assert jnp.allclose(out_f32, ref, atol=1e-5, rtol=1e-5)

    print("KERNEL_OK")
</pallas_src>

<mosaic_0001>
module attributes {stable_mosaic.version = 11 : i64} {
  func.func @_lora_mlp_kernel(%arg0: i32, %arg1: memref<8x32xf32, #tpu.memory_space<vmem>>, %arg2: memref<32x16xbf16, #tpu.memory_space<vmem>>, %arg3: memref<16x32xbf16, #tpu.memory_space<vmem>>, %arg4: memref<1x32xf32, #tpu.memory_space<vmem>>, %arg5: memref<8x32xf32, #tpu.memory_space<vmem>>) attributes {dimension_semantics = [#tpu.dimension_semantics<parallel>], iteration_bounds = array<i64: 2>, scalar_prefetch = 0 : i64, scratch_operands = 0 : i64, tpu.core_type = #tpu.core_type<tc>, window_params = [{transform_indices = @transform_0, window_bounds = array<i64: 8, 32>}, {pipeline_mode = #tpu.pipeline_mode<synchronous>, transform_indices = @transform_1, window_bounds = array<i64: 32, 16>}, {pipeline_mode = #tpu.pipeline_mode<synchronous>, transform_indices = @transform_2, window_bounds = array<i64: 16, 32>}, {pipeline_mode = #tpu.pipeline_mode<synchronous>, transform_indices = @transform_3, window_bounds = array<i64: 1, 32>}, {transform_indices = @transform_4, window_bounds = array<i64: 8, 32>}]} {
    %c0 = arith.constant 0 : index
    %c0_0 = arith.constant 0 : index
    %0 = vector.load %arg2[%c0, %c0_0] : memref<32x16xbf16, #tpu.memory_space<vmem>>, vector<32x16xbf16>
    %c0_1 = arith.constant 0 : index
    %c0_2 = arith.constant 0 : index
    %1 = vector.load %arg3[%c0_1, %c0_2] : memref<16x32xbf16, #tpu.memory_space<vmem>>, vector<16x32xbf16>
    %c0_3 = arith.constant 0 : index
    %c0_4 = arith.constant 0 : index
    %2 = vector.load %arg1[%c0_3, %c0_4] : memref<8x32xf32, #tpu.memory_space<vmem>>, vector<8x32xf32>
    %3 = arith.truncf %2 : vector<8x32xf32> to vector<8x32xbf16>
    %cst = arith.constant dense<0.000000e+00> : vector<8x16xf32>
    %4 = tpu.matmul %3, %0, %cst {dimension_numbers = #tpu.dot_dimension_numbers<[1], [0], [0], [1], [0, 0, 1, 1], [], []>} : vector<8x32xbf16>, vector<32x16xbf16>, vector<8x16xf32> -> vector<8x16xf32>
    %5 = math.tanh %4 : vector<8x16xf32>
    %6 = arith.truncf %5 : vector<8x16xf32> to vector<8x16xbf16>
    %cst_5 = arith.constant dense<0.000000e+00> : vector<8x32xf32>
    %7 = tpu.matmul %6, %1, %cst_5 {dimension_numbers = #tpu.dot_dimension_numbers<[1], [0], [0], [1], [0, 0, 1, 1], [], []>} : vector<8x16xbf16>, vector<16x32xbf16>, vector<8x32xf32> -> vector<8x32xf32>
    %c0_6 = arith.constant 0 : index
    %c0_7 = arith.constant 0 : index
    %8 = vector.load %arg4[%c0_6, %c0_7] : memref<1x32xf32, #tpu.memory_space<vmem>>, vector<1x32xf32>
    %9 = vector.broadcast %8 : vector<1x32xf32> to vector<8x32xf32>
    %10 = arith.addf %9, %7 : vector<8x32xf32>
    %c0_8 = arith.constant 0 : index
    %c0_9 = arith.constant 0 : index
    %11 = vector.load %arg5[%c0_8, %c0_9] : memref<8x32xf32, #tpu.memory_space<vmem>>, vector<8x32xf32>
    tpu.vector_store %arg5[%c0_8, %c0_9], %10 {strides = array<i32>} : memref<8x32xf32, #tpu.memory_space<vmem>>, vector<8x32xf32>,
    return
  }
  func.func @transform_0(%arg0: i32) -> (i32, i32) {
    %c0_i32 = arith.constant 0 : i32
    %c0_i32_0 = arith.constant 0 : i32
    return %arg0, %c0_i32 : i32, i32
  }
  func.func @transform_1(%arg0: i32) -> (i32, i32) {
    %c0_i32 = arith.constant 0 : i32
    %c0_i32_0 = arith.constant 0 : i32
    %c0_i32_1 = arith.constant 0 : i32
    return %c0_i32, %c0_i32_0 : i32, i32
  }
  func.func @transform_2(%arg0: i32) -> (i32, i32) {
    %c0_i32 = arith.constant 0 : i32
    %c0_i32_0 = arith.constant 0 : i32
    %c0_i32_1 = arith.constant 0 : i32
    return %c0_i32, %c0_i32_0 : i32, i32
  }
  func.func @transform_3(%arg0: i32) -> (i32, i32) {
    %c0_i32 = arith.constant 0 : i32
    %c0_i32_0 = arith.constant 0 : i32
    %c0_i32_1 = arith.constant 0 : i32
    return %c0_i32, %c0_i32_0 : i32, i32
  }
  func.func @transform_4(%arg0: i32) -> (i32, i32) {
    %c0_i32 = arith.constant 0 : i32
    %c0_i32_0 = arith.constant 0 : i32
    return %arg0, %c0_i32 : i32, i32
  }
}

</mosaic_0001>

<llo_original>
// kernel: tpu_custom_call.1
$region0: #{tpu_custom_call.1}
  #allocation0 [shape = 'u32[]', space=smem, size = 0x4, offset = 0x4, fixed_abs, tag = 'smem constant byte address 0x4 - core index']
  #allocation1 [shape = 'u32[144,128]{1,0:T(1,128)}', space=vmem, size = 0x12000, scoped, tag = 'internal scratch']
  %s0 = inlined_call_operand.vmem [shape: f32[16,32], index: 0, kind: input, shape index: {}]
  %s1 = inlined_call_operand.vmem [shape: bf16[32,16], index: 1, kind: input, shape index: {}]
  %s2 = inlined_call_operand.vmem [shape: bf16[16,32], index: 2, kind: input, shape index: {}]
  %s3 = inlined_call_operand.vmem [shape: f32[1,32], index: 3, kind: input, shape index: {}]
  %s4 = inlined_call_operand.hbm [shape: f32[16,32], index: 4, kind: output, shape index: {}]
  %s5 = sld [smem:[#allocation0]]
  $region49: #{tpu_custom_call.1} parent=0
    _
  %s7 = ssub.s32 1, %s5
  %s8 = scalar_select 0, %s7, %s5
  $region1: #{tpu_custom_call.1} parent=0
    #allocation2 [shape = 'u8[8192]{0}', space=vmem, size = 0x2000, scoped, tag = 'output window, operand 0']
    #allocation3 [shape = 's32[2]{0}', space=sflag, size = 0x8, scoped, tag = 'scoped memory for tpu_custom_call.1']
    %9 = vsyncpa [#allocation3], 0
    %s10 = scalar_lea.sflag [#allocation3], 1
    %11 = vsyncpa %s10, 0
    loop: start=0, step=1, limit=4
    $region2: #{tpu_custom_call.1} parent=1 // loop_pre_header
      _
    $region3: #{tpu_custom_call.1} parent=1 // loop_header
      %s13 = sphi 0, %s17
      %p14 = scmp.ge.s32.totalorder %s13, 4
      %s23 = sphi 0, %s25
      %s26 = sphi 0, %s23
      %s27 = sphi 0, %s26
      %s43 = sphi 0, %s27
      %s47 = sphi 0, %s47
      %s49 = sphi 0, %s47
      %s50 = sphi 0, %s49
      %s64 = sphi 0, %s50
      %s68 = sphi 0, %s68
      %s70 = sphi 0, %s68
      %s71 = sphi 0, %s70
      %s85 = sphi 0, %s71
      %s89 = sphi 0, %s89
      %s91 = sphi 0, %s89
      %s92 = sphi 0, %s91
      %s106 = sphi 0, %s92
      %s112 = sphi 0, %s114
      %s115 = sphi 0, %s112
      %s116 = sphi 0, %s115
      %s132 = sphi 0, %s116
    $region4: #{tpu_custom_call.1} parent=1 // loop_header_branch
      %16 = sbr.rel (%p14) target = $region8
    $region5: #{tpu_custom_call.1} parent=1 // loop_body
      %s18 = ssub.s32 %s13, 1
      %s19 = ssub.s32 %s13, 2
      %s20 = sadd.s32 %s13, 1
      %s21 = ssub.s32 %s13, %s20
      %p22 = scmp.eq.s32.totalorder %s21, 0
      %s24 = sadd.s32 %s23, 1
      %s25 = scalar_select %p22, %s23, %s24
      %p28 = pneg %p22
      %p29 = scmp.eq.s32.totalorder %s13, 1
      %p30 = por %p28, %p29
      %p31 = scmp.ne.s32.totalorder %s23, %s26
      %p32 = scmp.eq.s32.totalorder %s13, 0
      %p33 = por %p31, %p32
      %p34 = scmp.ne.s32.totalorder %s23, %s26
      %p35 = scmp.eq.s32.totalorder %s18, 1
      %p36 = por %p34, %p35
      %p37 = scmp.ne.s32.totalorder %s26, %s27
      %p38 = scmp.eq.s32.totalorder %s18, 0
      %p39 = por %p37, %p38
      %p40 = scmp.ne.s32.totalorder %s26, %s27
      %p41 = scmp.eq.s32.totalorder %s19, 1
      %p42 = por %p40, %p41
      %p44 = scmp.ne.s32.totalorder %s27, %s43
      %p45 = scmp.eq.s32.totalorder %s19, 0
      %p46 = por %p44, %p45
      %s48 = sadd.s32 %s47, 1
      %p51 = scmp.eq.s32.totalorder %s13, 1
      %p52 = scmp.ne.s32.totalorder %s47, %s49
      %p53 = scmp.eq.s32.totalorder %s13, 0
      %p54 = por %p52, %p53
      %p55 = scmp.ne.s32.totalorder %s47, %s49
      %p56 = scmp.eq.s32.totalorder %s18, 1
      %p57 = por %p55, %p56
      %p58 = scmp.ne.s32.totalorder %s49, %s50
      %p59 = scmp.eq.s32.totalorder %s18, 0
      %p60 = por %p58, %p59
      %p61 = scmp.ne.s32.totalorder %s49, %s50
      %p62 = scmp.eq.s32.totalorder %s19, 1
      %p63 = por %p61, %p62
      %p65 = scmp.ne.s32.totalorder %s50, %s64
      %p66 = scmp.eq.s32.totalorder %s19, 0
      %p67 = por %p65, %p66
      %s69 = sadd.s32 %s68, 1
      %p72 = scmp.eq.s32.totalorder %s13, 1
      %p73 = scmp.ne.s32.totalorder %s68, %s70
      %p74 = scmp.eq.s32.totalorder %s13, 0
      %p75 = por %p73, %p74
      %p76 = scmp.ne.s32.totalorder %s68, %s70
      %p77 = scmp.eq.s32.totalorder %s18, 1
      %p78 = por %p76, %p77
      %p79 = scmp.ne.s32.totalorder %s70, %s71
      %p80 = scmp.eq.s32.totalorder %s18, 0
      %p81 = por %p79, %p80
      %p82 = scmp.ne.s32.totalorder %s70, %s71
      %p83 = scmp.eq.s32.totalorder %s19, 1
      %p84 = por %p82, %p83
      %p86 = scmp.ne.s32.totalorder %s71, %s85
      %p87 = scmp.eq.s32.totalorder %s19, 0
      %p88 = por %p86, %p87
      %s90 = sadd.s32 %s89, 1
      %p93 = scmp.eq.s32.totalorder %s13, 1
      %p94 = scmp.ne.s32.totalorder %s89, %s91
      %p95 = scmp.eq.s32.totalorder %s13, 0
      %p96 = por %p94, %p95
      %p97 = scmp.ne.s32.totalorder %s89, %s91
      %p98 = scmp.eq.s32.totalorder %s18, 1
      %p99 = por %p97, %p98
      %p100 = scmp.ne.s32.totalorder %s91, %s92
      %p101 = scmp.eq.s32.totalorder %s18, 0
      %p102 = por %p100, %p101
      %p103 = scmp.ne.s32.totalorder %s91, %s92
      %p104 = scmp.eq.s32.totalorder %s19, 1
      %p105 = por %p103, %p104
      %p107 = scmp.ne.s32.totalorder %s92, %s106
      %p108 = scmp.eq.s32.totalorder %s19, 0
      %p109 = por %p107, %p108
      %s110 = ssub.s32 %s13, %s20
      %p111 = scmp.eq.s32.totalorder %s110, 0
      %s113 = sadd.s32 %s112, 1
      %s114 = scalar_select %p111, %s112, %s113
      %p117 = pneg %p111
      %p118 = scmp.eq.s32.totalorder %s13, 1
      %p119 = por %p117, %p118
      %p120 = scmp.ne.s32.totalorder %s112, %s115
      %p121 = scmp.eq.s32.totalorder %s13, 0
      %p122 = por %p120, %p121
      %p123 = scmp.ne.s32.totalorder %s112, %s115
      %p124 = scmp.eq.s32.totalorder %s18, 1
      %p125 = por %p123, %p124
      %p126 = scmp.ne.s32.totalorder %s115, %s116
      %p127 = scmp.eq.s32.totalorder %s18, 0
      %p128 = por %p126, %p127
      %p129 = scmp.ne.s32.totalorder %s115, %s116
      %p130 = scmp.eq.s32.totalorder %s19, 1
      %p131 = por %p129, %p130
      %p133 = scmp.ne.s32.totalorder %s116, %s132
      %p134 = scmp.eq.s32.totalorder %s19, 0
      %p135 = por %p133, %p134
      %p136 = scmp.le.s32.totalorder 1, %s13
      %p137 = scmp.lt.s32.totalorder %s13, 3
      %p138 = pnand %p136, %p137
      %p139 = pneg %p138
      // Predicated region
      $region9: #{tpu_custom_call.1} parent=5 // pred_check
        _
      $region10: #{tpu_custom_call.1} parent=5 // pred_check_branch
        %141 = sbr.rel (%p138) target = $region12
      $region11: #{tpu_custom_call.1} parent=5 // pred_region
        %s142 = ssub.s32 %s13, 1
        // Predicated region
        $region13: #{tpu_custom_call.1} parent=11 // pred_check
          %p143 = pneg %p60
        $region14: #{tpu_custom_call.1} parent=11 // pred_check_branch
          %145 = sbr.rel (%p143) target = $region16
        $region15: #{tpu_custom_call.1} parent=11 // pred_region
          _
        $region16: #{tpu_custom_call.1} parent=11 // pred_fallthru
          _
        // Predicated region
        $region17: #{tpu_custom_call.1} parent=11 // pred_check
          %p146 = pneg %p81
        $region18: #{tpu_custom_call.1} parent=11 // pred_check_branch
          %148 = sbr.rel (%p146) target = $region20
        $region19: #{tpu_custom_call.1} parent=11 // pred_region
          _
        $region20: #{tpu_custom_call.1} parent=11 // pred_fallthru
          _
        // Predicated region
        $region21: #{tpu_custom_call.1} parent=11 // pred_check
          %p149 = pneg %p102
        $region22: #{tpu_custom_call.1} parent=11 // pred_check_branch
          %151 = sbr.rel (%p149) target = $region24
        $region23: #{tpu_custom_call.1} parent=11 // pred_region
          _
        $region24: #{tpu_custom_call.1} parent=11 // pred_fallthru
          _
      $region12: #{tpu_custom_call.1} parent=5 // pred_fallthru
        _
      %p152 = scmp.lt.s32.totalorder %s13, 2
      // Predicated region
      $region25: #{tpu_custom_call.1} parent=5 // pred_check
        %p153 = pneg %p152
      $region26: #{tpu_custom_call.1} parent=5 // pred_check_branch
        %155 = sbr.rel (%p153) target = $region28
      $region27: #{tpu_custom_call.1} parent=5 // pred_region
        // Predicated region
        $region29: #{tpu_custom_call.1} parent=27 // pred_check
          %p156 = pneg %p33
        $region30: #{tpu_custom_call.1} parent=27 // pred_check_branch
          %158 = sbr.rel (%p156) target = $region32
        $region31: #{tpu_custom_call.1} parent=27 // pred_region
          %p159 = scmp.lt.s32.totalorder %s13, 1
          %s160 = scalar_select %p159, %s13, 1
          %s161 = smul.addr %s160, 8
          %s162 = scalar_lea.vmem %s0, %s161
        $region32: #{tpu_custom_call.1} parent=27 // pred_fallthru
          _
      $region28: #{tpu_custom_call.1} parent=5 // pred_fallthru
        _
      %p163 = scmp.le.s32.totalorder 1, %s13
      %p164 = scmp.lt.s32.totalorder %s13, 3
      %p165 = pnand %p163, %p164
      %p166 = pneg %p165
      // Predicated region
      $region33: #{tpu_custom_call.1} parent=5 // pred_check
        _
      $region34: #{tpu_custom_call.1} parent=5 // pred_check_branch
        %168 = sbr.rel (%p165) target = $region36
      $region35: #{tpu_custom_call.1} parent=5 // pred_region
        %s169 = ssub.s32 %s13, 1
        %p170 = scmp.lt.s32.totalorder %s18, 1
        %s171 = scalar_select %p170, %s18, 1
        %s172 = smul.addr %s171, 8
        %s173 = scalar_lea.vmem %s0, %s172
        %p174 = pneg %p39
        %p175 = pneg %p36
        %p176 = pneg %p60
        %p177 = pneg %p57
        %p178 = pneg %p81
        %p179 = pneg %p78
        %p180 = pneg %p102
        %p181 = pneg %p99
        %p182 = pneg %p128
        %p183 = pneg %p125
        %s184 = sand.u32 %s115, 1
        %s185 = scalar_lea.sflag [#allocation3], %s184
        %s186 = sand.u32 %s115, 1
        %s187 = smul.addr %s186, 8
        %s188 = scalar_lea.vmem [#allocation2], %s187
        %p189 = scmp.lt.s32.totalorder %s18, 1
        %s190 = scalar_select %p189, %s18, 1
        %s191 = smul.addr %s190, 8
        %s192 = scalar_lea.vmem %s0, %s191
        %v194 = vld [vmem:[%s1] sm:$0xf]
        %v195 = vld [vmem:[%s1 + $0x4] sm:$0xf]
        %v196 = vld [vmem:[%s1 + $0x8] sm:$0xf]
        %v197 = vld [vmem:[%s1 + $0xc] sm:$0xf]
        %v198 = vld [vmem:[%s2] sm:$0xf]
        %v199 = vld [vmem:[%s2 + $0x4] sm:$0xf]
        %v200 = vld [vmem:[%s192] sm:$0xff]
        %v201 = vpack.c.bf16 %v200, %v200
        %v206 = vunpack.c.l.b16 %v194
        %v207 = vunpack.c.l.b16 %v195
        %v208 = vunpack.c.l.b16 %v196
        %v209 = vunpack.c.l.b16 %v197
        %v210 = vpack.c.b16 %v207, %v206
        %v211 = vpack.c.b16 %v209, %v208
        %vm214 = vcmask 261120
        %v216 = vsel %vm214, %v201, 0
        %218 = vmatprep.subr.bf16.mxu0 0
        %219 = vmatpush1.bf16.msra.mxu0 %v210
        %220 = vmatprep.subr.bf16.mxu0 0
        %221 = vmatpush1.bf16.msra.mxu0 %v211
        %222 = vmatprep.subr.bf16.mxu0 0
        %223 = vmatpush1.bf16.msra.mxu0 0
        %224 = vmatprep.subr.bf16.mxu0 0
        %225 = vmatpush1.bf16.msra.mxu0 0
        %226 = vmatprep.subr.bf16.mxu0 0
        %227 = vmatpush1.bf16.msra.mxu0 0
        %228 = vmatprep.subr.bf16.mxu0 0
        %229 = vmatpush1.bf16.msra.mxu0 0
        %230 = vmatprep.subr.bf16.mxu0 0
        %231 = vmatpush1.bf16.msra.mxu0 0
        %232 = vmatprep.subr.bf16.mxu0 0
        %233 = vmatpush1.bf16.msra.mxu0 0
        %234 = vmatprep.subr.bf16.mxu0 0
        %235 = vmatpush1.bf16.msra.mxu0 0
        %236 = vmatprep.subr.bf16.mxu0 0
        %237 = vmatpush1.bf16.msra.mxu0 0
        %238 = vmatprep.subr.bf16.mxu0 0
        %239 = vmatpush1.bf16.msra.mxu0 0
        %240 = vmatprep.subr.bf16.mxu0 0
        %241 = vmatpush1.bf16.msra.mxu0 0
        %242 = vmatprep.subr.bf16.mxu0 0
        %243 = vmatpush1.bf16.msra.mxu0 0
        %244 = vmatprep.subr.bf16.mxu0 0
        %245 = vmatpush1.bf16.msra.mxu0 0
        %246 = vmatprep.subr.bf16.mxu0 0
        %247 = vmatpush1.bf16.msra.mxu0 0
        %248 = vmatprep.subr.bf16.mxu0 0
        %249 = vmatpush1.bf16.msra.mxu0 0
        %250 = vmatprep.mubr.bf16.mxu0 0
        %251 = vmatmul.mubr.bf16.gmra.mrb[0].mxu0 %v216
        %v252 = vpop.f32.mrb[0].mxu0
        %v253 = vadd.f32 0.0, %v252
        %v254 = vpop.f32.mrb[0].mxu0
        %v255 = vpop.f32.mrb[0].mxu0
        %v256 = vpop.f32.mrb[0].mxu0
        %257 = vdwg.mxu0
        %v258 = vtanh.pop %v253
        %v259 = vpack.c.bf16 %v258, %v258
        %v262 = vunpack.c.l.b16 %v198
        %v263 = vunpack.c.l.b16 %v199
        %v264 = vpack.c.b16 %v263, %v262
        %vm266 = vcmask 130048
        %v268 = vsel %vm266, %v259, 0
        %270 = vmatprep.subr.bf16.mxu0 0
        %271 = vmatpush1.bf16.msra.mxu0 %v264
        %272 = vmatprep.subr.bf16.mxu0 0
        %273 = vmatpush1.bf16.msra.mxu0 0
        %274 = vmatprep.subr.bf16.mxu0 0
        %275 = vmatpush1.bf16.msra.mxu0 0
        %276 = vmatprep.subr.bf16.mxu0 0
        %277 = vmatpush1.bf16.msra.mxu0 0
        %278 = vmatprep.subr.bf16.mxu0 0
        %279 = vmatpush1.bf16.msra.mxu0 0
        %280 = vmatprep.subr.bf16.mxu0 0
        %281 = vmatpush1.bf16.msra.mxu0 0
        %282 = vmatprep.subr.bf16.mxu0 0
        %283 = vmatpush1.bf16.msra.mxu0 0
        %284 = vmatprep.subr.bf16.mxu0 0
        %285 = vmatpush1.bf16.msra.mxu0 0
        %286 = vmatprep.subr.bf16.mxu0 0
        %287 = vmatpush1.bf16.msra.mxu0 0
        %288 = vmatprep.subr.bf16.mxu0 0
        %289 = vmatpush1.bf16.msra.mxu0 0
        %290 = vmatprep.subr.bf16.mxu0 0
        %291 = vmatpush1.bf16.msra.mxu0 0
        %292 = vmatprep.subr.bf16.mxu0 0
        %293 = vmatpush1.bf16.msra.mxu0 0
        %294 = vmatprep.subr.bf16.mxu0 0
        %295 = vmatpush1.bf16.msra.mxu0 0
        %296 = vmatprep.subr.bf16.mxu0 0
        %297 = vmatpush1.bf16.msra.mxu0 0
        %298 = vmatprep.subr.bf16.mxu0 0
        %299 = vmatpush1.bf16.msra.mxu0 0
        %300 = vmatprep.subr.bf16.mxu0 0
        %301 = vmatpush1.bf16.msra.mxu0 0
        %302 = vmatprep.mubr.bf16.mxu0 0
        %303 = vmatmul.mubr.bf16.gmra.mrb[0].mxu0 %v268
        %v304 = vpop.f32.mrb[0].mxu0
        %v305 = vadd.f32 0.0, %v304
        %v306 = vpop.f32.mrb[0].mxu0
        %v307 = vpop.f32.mrb[0].mxu0
        %v308 = vpop.f32.mrb[0].mxu0
        %309 = vdwg.mxu0
        %v310 = vld [vmem:[%s3] sm:$0x1]
        %v312 = vlaneseq
        %v313 = vshrl.u32 %v312, 7
        %v314 = vsub.s32 0, %v313
        %v315 = vrot.slane %v310, %v314
        %v317 = vadd.f32 %v315, %v305
        %318 = vst.msk [vmem:[%s188] sm:$0xff] %vm214, %v317
        %s319 = sand.u32 %s115, 1
        %s320 = scalar_lea.sflag [#allocation3], %s319
        %s321 = sand.u32 %s115, 1
        %s322 = smul.addr %s321, 8
        %s323 = scalar_lea.vmem [#allocation2], %s322
        // Predicated region
        $region37: #{tpu_custom_call.1} parent=35 // pred_check
          %p324 = pneg %p125
        $region38: #{tpu_custom_call.1} parent=35 // pred_check_branch
          %326 = sbr.rel (%p324) target = $region40
        $region39: #{tpu_custom_call.1} parent=35 // pred_region
          %s328 = ssub.s32 128, 128
          %329 = vsyncadd %s320, %s328
          %s330 = smul.addr %s18, 128
          %s331 = scalar_lea.hbm %s4, %s330
          %s333 = sshll.u32 %s323, 4
          %s334 = int_to_ptr.vmem [resolvable:$true] %s333
          %336 = dma.vmem_to_hbm [thread:$0]  %s334, 128, %s331, %s320
        $region40: #{tpu_custom_call.1} parent=35 // pred_fallthru
          _
      $region36: #{tpu_custom_call.1} parent=5 // pred_fallthru
        _
      %p337 = scmp.le.s32.totalorder 2, %s13
      // Predicated region
      $region41: #{tpu_custom_call.1} parent=5 // pred_check
        %p338 = pneg %p337
      $region42: #{tpu_custom_call.1} parent=5 // pred_check_branch
        %340 = sbr.rel (%p338) target = $region44
      $region43: #{tpu_custom_call.1} parent=5 // pred_region
        %s341 = ssub.s32 %s13, 2
        // Predicated region
        $region45: #{tpu_custom_call.1} parent=43 // pred_check
          %p342 = pneg %p131
        $region46: #{tpu_custom_call.1} parent=43 // pred_check_branch
          %344 = sbr.rel (%p342) target = $region48
        $region47: #{tpu_custom_call.1} parent=43 // pred_region
          %s345 = sand.u32 %s116, 1
          %s346 = scalar_lea.sflag [#allocation3], %s345
          %s347 = sand.u32 %s116, 1
          %s348 = smul.addr %s347, 8
          %s349 = scalar_lea.vmem [#allocation2], %s348
          %350 = dma.done %s346, 128
        $region48: #{tpu_custom_call.1} parent=43 // pred_fallthru
          _
      $region44: #{tpu_custom_call.1} parent=5 // pred_fallthru
        _
    $region6: #{tpu_custom_call.1} parent=1 // loop_footer
      %s17 = sadd.s32 1, %s13
    $region7: #{tpu_custom_call.1} parent=1 // loop_footer_branch
      %12 = sbr.rel target = $region3
    $region8: #{tpu_custom_call.1} parent=1 // loop_exit
      _
    %351 = vsyncpa [#allocation3], 1
    %s352 = scalar_lea.sflag [#allocation3], 1
    %353 = vsyncpa %s352, 1

</llo_original>
